<compile_context>
chip_gen: v6e
topology: v6e:2x2x1
jax: 0.10.0
libtpu: 0.0.40
codegen_flags: <defaults>
</compile_context>

<pallas_src>
import functools

import jax
import jax.numpy as jnp
from jax import lax
from jax.experimental import pallas as pl
from jax.experimental.pallas import tpu as pltpu


def _cdiv(a, b):
    return (a + b - 1) // b


def _round_up(a, b):
    return _cdiv(a, b) * b


def _round_down(a, b):
    return (a // b) * b


def _evonorm_s0_kernel(x_ref, p_ref, o_ref, *, eps, hw):
    # x_ref: (TR, HW) tile of (sample, channel) rows.
    # p_ref: (TR, 3) per-row [v, gamma, beta] in f32.
    x = x_ref[...].astype(jnp.float32)

    p = p_ref[...]
    v = p[:, 0:1]
    gamma = p[:, 1:2]
    beta = p[:, 2:3]

    # Two-pass unbiased variance over the lane axis (matches torch.var ddof=1
    # and avoids the catastrophic cancellation of the s2 - s1^2/n form).
    mean = jnp.sum(x, axis=1, keepdims=True) * jnp.float32(1.0 / hw)
    centered = x - mean
    ss = jnp.sum(centered * centered, axis=1, keepdims=True)
    # hw == 1 guard: torch.var(ddof=1) would give NaN; we return var = 0.
    var = ss * jnp.float32(1.0 / max(hw - 1, 1))

    # Fold gamma into the per-row scale; rsqrt avoids a full-tile divide.
    scale = lax.rsqrt(var + jnp.float32(eps)) * gamma  # (TR, 1)

    num = x * jax.nn.sigmoid(v * x)  # swish-with-v numerator
    o_ref[...] = (num * scale + beta).astype(o_ref.dtype)


def evonorm_nd_s0(x, v, gamma, beta, *, eps=1e-5, target_block_bytes=3 << 20):
    """x: (N, C, H, W). v, gamma, beta: (1, C, 1, 1). Returns (N, C, H, W)."""
    N, C, H, W = x.shape
    HW = H * W
    NC = N * C
    itemsize = jnp.dtype(x.dtype).itemsize

    # Sublane tile of the input dtype: 8 (f32), 16 (bf16), 32 (int8/fp8).
    sublane = max(8, 32 // itemsize)

    # Per-row VMEM footprint (lanes pad to 128 in VMEM): double-buffered in +
    # out blocks in the input dtype, ~3 full-tile f32 temporaries (upcast,
    # centered, numerator), and the lane-padded double-buffered param block.
    hw_vmem = _round_up(HW, 128)
    per_row_vmem = hw_vmem * (4 * itemsize + 3 * 4) + 2 * 128 * 4

    vmem_cap = 48 << 20   # stay well inside v7x's 64 MiB physical per-TC VMEM
    slack = 4 << 20

    if NC <= sublane:
        # Tiny row count: a single block covering the whole row axis (block
        # dim equal to the full array dim is always legal).
        tr = NC
        if per_row_vmem * tr > vmem_cap - slack:
            # TODO(synk): add an inner "arbitrary" HW-chunk grid axis with
            # sum/sum-sq scratch accumulators for rows too large for VMEM.
            raise ValueError(f"H*W={HW} too large for a single-row VMEM tile")
    else:
        tr_budget = _round_down((vmem_cap - slack) // per_row_vmem, sublane)
        if tr_budget < sublane:
            # TODO(synk): chunked-HW fallback (see above) for extreme H*W.
            raise ValueError(f"H*W={HW} too large for a single-row VMEM tile")

        # Target ~2-4 MiB input blocks; more grid steps beats bigger blocks.
        tr = max(sublane,
                 _round_down(target_block_bytes // (hw_vmem * itemsize), sublane))
        tr = min(tr, tr_budget, _round_up(NC, sublane))

        # Prefer >= 4 grid steps (>= 2 per TensorCore on v7x) when NC allows.
        min_steps = 4
        if _cdiv(NC, tr) < min_steps and NC >= min_steps * sublane:
            tr = max(sublane, _round_up(_cdiv(NC, min_steps), sublane))

        # Prefer an even step count for v7x megacore load balance.
        steps = _cdiv(NC, tr)
        if steps >= 3 and steps % 2 == 1:
            tr_even = max(sublane, _round_up(_cdiv(NC, steps + 1), sublane))
            if tr_even <= tr and _cdiv(NC, tr_even) % 2 == 0:
                tr = tr_even

    steps = _cdiv(NC, tr)

    # Explicit scoped-VMEM budget (v5e default of 16 MiB is too small for the
    # double-buffered blocks): in/out double buffers + f32 temporaries +
    # lane-padded param double buffer + slack, capped below v7x physical VMEM.
    block_in = tr * hw_vmem * itemsize
    block_tmp = tr * hw_vmem * 4
    block_par = tr * 128 * 4
    vmem_limit = int(min(
        vmem_cap,
        max(32 << 20, 4 * block_in + 3 * block_tmp + 2 * block_par + slack)))

    # Rows = (n, c) instances. No padding, no epilogue slice: Pallas masks the
    # partial edge block (garbage rows there are never written back) and the
    # non-128-multiple HW tail (block last dim == full array dim).
    x2 = x.reshape(NC, HW)

    # Pack per-channel params into one (NC, 3) f32 array: [v, gamma, beta]
    # (~12 bytes/row of extra traffic vs itemsize*HW bytes/row of x).
    p_c = jnp.concatenate(
        [v.reshape(C, 1), gamma.reshape(C, 1), beta.reshape(C, 1)], axis=1
    ).astype(jnp.float32)
    p2 = jnp.tile(p_c, (N, 1))  # (NC, 3)

    kernel = functools.partial(_evonorm_s0_kernel, eps=eps, hw=HW)

    cost = pl.CostEstimate(
        flops=8 * NC * HW,
        transcendentals=NC * HW,
        bytes_accessed=2 * NC * HW * itemsize + NC * 3 * 4,
    )

    out2 = pl.pallas_call(
        kernel,
        out_shape=jax.ShapeDtypeStruct((NC, HW), x.dtype),
        grid_spec=pltpu.PrefetchScalarGridSpec(
            num_scalar_prefetch=0,
            grid=(steps,),
            in_specs=[
                pl.BlockSpec((tr, HW), lambda i: (i, 0)),
                pl.BlockSpec((tr, 3), lambda i: (i, 0)),
            ],
            out_specs=pl.BlockSpec((tr, HW), lambda i: (i, 0)),
        ),
        compiler_params=pltpu.CompilerParams(
            dimension_semantics=("parallel",),
            vmem_limit_bytes=vmem_limit,
        ),
        cost_estimate=cost,
    )(x2, p2)

    return out2.reshape(N, C, H, W)


def evonorm_reference(x, v, gamma, beta, eps=1e-5):
    """Plain-JAX reference of the PyTorch S0 path (groups = C)."""
    N, C, H, W = x.shape
    num = x * jax.nn.sigmoid(v * x)
    xg = x.reshape(N, C, 1, H, W)
    var = jnp.var(xg, axis=(2, 3, 4), keepdims=True, ddof=1)  # unbiased
    std = jnp.sqrt(var + eps).reshape(N, C, 1, 1)
    std = jnp.broadcast_to(std, (N, C, H, W))
    return num / std * gamma + beta


if __name__ == "__main__":
    key = jax.random.PRNGKey(0)
    N, C, H, W = 2, 4, 16, 16

    x = jax.random.normal(key, (N, C, H, W), dtype=jnp.float32)

    # Deterministic parameter init matching EvoNormND.__init__ (affine=True):
    #   gamma = ones(1, C, 1, 1); beta = zeros(1, C, 1, 1); v = ones(1, C, 1, 1)
    gamma = jnp.ones((1, C, 1, 1), dtype=jnp.float32)
    beta = jnp.zeros((1, C, 1, 1), dtype=jnp.float32)
    v = jnp.ones((1, C, 1, 1), dtype=jnp.float32)

    out = evonorm_nd_s0(x, v, gamma, beta, eps=1e-5)
    out = jax.block_until_ready(out)

    ref = evonorm_reference(x, v, gamma, beta, eps=1e-5)
    assert out.shape == (N, C, H, W)
    assert jnp.allclose(out, ref, atol=2e-5, rtol=2e-5), "mismatch vs reference"

    print("KERNEL_OK")
</pallas_src>

<mosaic_0001>
module attributes {stable_mosaic.version = 11 : i64} {
  func.func @_evonorm_s0_kernel(%arg0: i32, %arg1: memref<8x256xf32, #tpu.memory_space<vmem>>, %arg2: memref<8x3xf32, #tpu.memory_space<vmem>>, %arg3: memref<8x256xf32, #tpu.memory_space<vmem>>) attributes {dimension_semantics = [#tpu.dimension_semantics<parallel>], iteration_bounds = array<i64: 1>, scalar_prefetch = 0 : i64, scratch_operands = 0 : i64, tpu.core_type = #tpu.core_type<tc>, window_params = [{transform_indices = @transform_0, window_bounds = array<i64: 8, 256>}, {transform_indices = @transform_1, window_bounds = array<i64: 8, 3>}, {transform_indices = @transform_2, window_bounds = array<i64: 8, 256>}]} {
    %c0 = arith.constant 0 : index
    %c0_0 = arith.constant 0 : index
    %0 = vector.load %arg1[%c0, %c0_0] : memref<8x256xf32, #tpu.memory_space<vmem>>, vector<8x256xf32>
    %c0_1 = arith.constant 0 : index
    %c0_2 = arith.constant 0 : index
    %1 = vector.load %arg2[%c0_1, %c0_2] : memref<8x3xf32, #tpu.memory_space<vmem>>, vector<8x3xf32>
    %2 = vector.extract_strided_slice %1 {offsets = [0, 0], sizes = [8, 1], strides = [1, 1]} : vector<8x3xf32> to vector<8x1xf32>
    %3 = vector.extract_strided_slice %1 {offsets = [0, 1], sizes = [8, 1], strides = [1, 1]} : vector<8x3xf32> to vector<8x1xf32>
    %4 = vector.extract_strided_slice %1 {offsets = [0, 2], sizes = [8, 1], strides = [1, 1]} : vector<8x3xf32> to vector<8x1xf32>
    %cst = arith.constant dense<0.000000e+00> : vector<8xf32>
    %5 = vector.multi_reduction <add>, %0, %cst [1] : vector<8x256xf32> to vector<8xf32>
    %6 = vector.shape_cast %5 : vector<8xf32> to vector<8x1xf32>
    %cst_3 = arith.constant 3.906250e-03 : f32
    %7 = vector.broadcast %cst_3 : f32 to vector<8x1xf32>
    %8 = arith.mulf %6, %7 : vector<8x1xf32>
    %9 = vector.broadcast %8 : vector<8x1xf32> to vector<8x256xf32>
    %10 = arith.subf %0, %9 : vector<8x256xf32>
    %11 = arith.mulf %10, %10 : vector<8x256xf32>
    %cst_4 = arith.constant dense<0.000000e+00> : vector<8xf32>
    %12 = vector.multi_reduction <add>, %11, %cst_4 [1] : vector<8x256xf32> to vector<8xf32>
    %13 = vector.shape_cast %12 : vector<8xf32> to vector<8x1xf32>
    %cst_5 = arith.constant 0.00392156886 : f32
    %14 = vector.broadcast %cst_5 : f32 to vector<8x1xf32>
    %15 = arith.mulf %13, %14 : vector<8x1xf32>
    %cst_6 = arith.constant 9.99999974E-6 : f32
    %16 = vector.broadcast %cst_6 : f32 to vector<8x1xf32>
    %17 = arith.addf %15, %16 : vector<8x1xf32>
    %18 = math.rsqrt %17 : vector<8x1xf32>
    %19 = arith.mulf %18, %3 : vector<8x1xf32>
    %20 = vector.broadcast %2 : vector<8x1xf32> to vector<8x256xf32>
    %21 = arith.mulf %20, %0 : vector<8x256xf32>
    %22 = arith.negf %21 : vector<8x256xf32>
    %23 = math.exp %22 : vector<8x256xf32>
    %cst_7 = arith.constant 1.000000e+00 : f32
    %24 = vector.broadcast %cst_7 : f32 to vector<8x256xf32>
    %25 = arith.addf %24, %23 : vector<8x256xf32>
    %26 = arith.divf %24, %25 : vector<8x256xf32>
    %27 = arith.mulf %0, %26 : vector<8x256xf32>
    %28 = vector.broadcast %19 : vector<8x1xf32> to vector<8x256xf32>
    %29 = arith.mulf %27, %28 : vector<8x256xf32>
    %30 = vector.broadcast %4 : vector<8x1xf32> to vector<8x256xf32>
    %31 = arith.addf %29, %30 : vector<8x256xf32>
    %c0_8 = arith.constant 0 : index
    %c0_9 = arith.constant 0 : index
    %32 = vector.load %arg3[%c0_8, %c0_9] : memref<8x256xf32, #tpu.memory_space<vmem>>, vector<8x256xf32>
    tpu.vector_store %arg3[%c0_8, %c0_9], %31 {strides = array<i32>} : memref<8x256xf32, #tpu.memory_space<vmem>>, vector<8x256xf32>,
    return
  }
  func.func @transform_0(%arg0: i32) -> (i32, i32) {
    %c0_i32 = arith.constant 0 : i32
    %c0_i32_0 = arith.constant 0 : i32
    return %arg0, %c0_i32 : i32, i32
  }
  func.func @transform_1(%arg0: i32) -> (i32, i32) {
    %c0_i32 = arith.constant 0 : i32
    %c0_i32_0 = arith.constant 0 : i32
    return %arg0, %c0_i32 : i32, i32
  }
  func.func @transform_2(%arg0: i32) -> (i32, i32) {
    %c0_i32 = arith.constant 0 : i32
    %c0_i32_0 = arith.constant 0 : i32
    return %arg0, %c0_i32 : i32, i32
  }
}

</mosaic_0001>

<llo_original>
// kernel: tpu_custom_call.1
$region0: #{tpu_custom_call.1}
  #allocation0 [shape = 'u32[]', space=smem, size = 0x4, offset = 0x4, fixed_abs, tag = 'smem constant byte address 0x4 - core index']
  #allocation1 [shape = 'u32[144,128]{1,0:T(1,128)}', space=vmem, size = 0x12000, scoped, tag = 'internal scratch']
  %s0 = inlined_call_operand.hbm [shape: f32[8,256], index: 0, kind: input, shape index: {}]
  %s1 = inlined_call_operand.vmem [shape: f32[8,3], index: 1, kind: input, shape index: {}]
  %s2 = inlined_call_operand.hbm [shape: f32[8,256], index: 2, kind: output, shape index: {}]
  %s3 = sld [smem:[#allocation0]]
  $region22: #{tpu_custom_call.1} parent=0
    _
  %s5 = ssub.s32 1, %s3
  %s6 = scalar_select 0, %s5, %s3
  $region1: #{tpu_custom_call.1} parent=0
    #allocation2 [shape = 'u8[8192]{0}', space=vmem, size = 0x2000, scoped, tag = 'input window, operand 0, single buffered']
    #allocation3 [shape = 's32[1]{0}', space=sflag, size = 0x4, scoped, tag = 'scoped memory for tpu_custom_call.1']
    #allocation4 [shape = 's32[1]{0}', space=sflag, size = 0x4, scoped, tag = 'scoped memory for tpu_custom_call.1']
    #allocation5 [shape = 'u8[8192]{0}', space=vmem, size = 0x2000, scoped, tag = 'output window, operand 0, single buffered']
    %7 = vsyncpa [#allocation3], 0
    %8 = vsyncpa [#allocation4], 0
    // Predicated region
    $region2: #{tpu_custom_call.1} parent=1 // pred_check
      _
    $region3: #{tpu_custom_call.1} parent=1 // pred_check_branch
      %10 = sbr.rel (0) target = $region5
    $region4: #{tpu_custom_call.1} parent=1 // pred_region
      %s12 = ssub.s32 256, 256
      %13 = vsyncadd [#allocation3], %s12
      %s15 = sshll.u32 [#allocation2], 4
      %s16 = int_to_ptr.vmem [resolvable:$true] %s15
      %18 = dma.hbm_to_vmem [thread:$0]  %s0, 256, %s16, [#allocation3]
    $region5: #{tpu_custom_call.1} parent=1 // pred_fallthru
      _
    // Predicated region
    $region6: #{tpu_custom_call.1} parent=1 // pred_check
      _
    $region7: #{tpu_custom_call.1} parent=1 // pred_check_branch
      %20 = sbr.rel (0) target = $region9
    $region8: #{tpu_custom_call.1} parent=1 // pred_region
      _
    $region9: #{tpu_custom_call.1} parent=1 // pred_fallthru
      _
    // Predicated region
    $region10: #{tpu_custom_call.1} parent=1 // pred_check
      _
    $region11: #{tpu_custom_call.1} parent=1 // pred_check_branch
      %22 = sbr.rel (0) target = $region13
    $region12: #{tpu_custom_call.1} parent=1 // pred_region
      %23 = dma.done [#allocation3], 256
    $region13: #{tpu_custom_call.1} parent=1 // pred_fallthru
      _
    %v24 = vld [vmem:[#allocation2] sm:$0xff]
    %v25 = vld [vmem:[#allocation2 + $0x8] sm:$0xff]
    %v26 = vld [vmem:[%s1] sm:$0xff]
    %v27 = vadd.f32 %v24, %v25
    %28 = vadd.xlane.f32.xlu0 %v27
    %v29 = vpop.xlane.xlu0 %28
    %v30 = vmul.f32 %v29, 0.00390625
    %v31 = vsub.f32 %v24, %v30
    %v32 = vsub.f32 %v25, %v30
    %v33 = vmul.f32 %v31, %v31
    %v34 = vmul.f32 %v32, %v32
    %v35 = vadd.f32 %v33, %v34
    %36 = vadd.xlane.f32.xlu0 %v35
    %v37 = vpop.xlane.xlu0 %36
    %v38 = vmul.f32 %v37, 0.003921569
    %v39 = vadd.f32 %v38, 1e-05
    %v40 = vrsqrt.pop %v39
    %v41 = vmul.f32 %v40, %v26
    %43 = vset.pattern.permute.xlu0 0
    %44 = vperm.xlu0 %43, %v26
    %v45 = vpop.permute.xlu0 %44
    %v47 = vmul.f32 %v45, %v24
    %v48 = vmul.f32 %v45, %v25
    %v49 = vxor.u32 %v47, 2147483648
    %v50 = vxor.u32 %v48, 2147483648
    %v51 = vmul.f32 %v49, 1.442695
    %v52 = vpow.pop %v51
    %v53 = vmul.f32 %v50, 1.442695
    %v54 = vpow.pop %v53
    %v55 = vadd.f32 %v52, 1.0
    %v56 = vadd.f32 %v54, 1.0
    %v57 = vrcp.pop %v55
    %v58 = vmul.f32 1.0, %v57
    %v59 = vrcp.pop %v56
    %v60 = vmul.f32 1.0, %v59
    %v61 = vmul.f32 %v24, %v58
    %v62 = vmul.f32 %v25, %v60
    %64 = vset.pattern.permute.xlu0 1
    %65 = vperm.xlu0 %64, %v41
    %v66 = vpop.permute.xlu0 %65
    %v68 = vmul.f32 %v61, %v66
    %v69 = vmul.f32 %v62, %v66
    %70 = vset.pattern.permute.xlu0 2
    %71 = vperm.xlu0 %70, %v26
    %v72 = vpop.permute.xlu0 %71
    %v74 = vadd.f32 %v68, %v72
    %v75 = vadd.f32 %v69, %v72
    %76 = vst [vmem:[#allocation5] sm:$0xff] %v74
    %77 = vst [vmem:[#allocation5 + $0x8] sm:$0xff] %v75
    // Predicated region
    $region14: #{tpu_custom_call.1} parent=1 // pred_check
      _
    $region15: #{tpu_custom_call.1} parent=1 // pred_check_branch
      %79 = sbr.rel (0) target = $region17
    $region16: #{tpu_custom_call.1} parent=1 // pred_region
      %s81 = ssub.s32 256, 256
      %82 = vsyncadd [#allocation4], %s81
      %s84 = sshll.u32 [#allocation5], 4
      %s85 = int_to_ptr.vmem [resolvable:$true] %s84
      %87 = dma.vmem_to_hbm [thread:$0]  %s85, 256, %s2, [#allocation4]
    $region17: #{tpu_custom_call.1} parent=1 // pred_fallthru
      _
    // Predicated region
    $region18: #{tpu_custom_call.1} parent=1 // pred_check
      _
    $region19: #{tpu_custom_call.1} parent=1 // pred_check_branch
      %89 = sbr.rel (0) target = $region21
    $region20: #{tpu_custom_call.1} parent=1 // pred_region
      %90 = dma.done [#allocation4], 256
    $region21: #{tpu_custom_call.1} parent=1 // pred_fallthru
      _
    %91 = vsyncpa [#allocation3], 1
    %92 = vsyncpa [#allocation4], 1

</llo_original>
